<compile_context>
chip_gen: v6e
topology: v6e:2x2x1
jax: 0.10.0
libtpu: 0.0.40
codegen_flags: <defaults>
</compile_context>

<pallas_src>
import functools

import jax
import jax.numpy as jnp
from jax import lax
from jax.experimental import pallas as pl
from jax.experimental.pallas import tpu as pltpu


_VMEM_HEADROOM_BYTES = 8 * 1024 * 1024
_VMEM_LIMIT_CAP_BYTES = 96 * 1024 * 1024        # never request more than this
_PASS1_TILE_CAP_ELEMS = 4 * 1024 * 1024         # ~16 MiB f32 input tile (pass 1)
_PASS2_TILE_CAP_ELEMS = 2 * 1024 * 1024         # ~8 MiB f32 in + 8 MiB out (pass 2)


def _vmem_limit_bytes() -> int:
    """Chip-aware VMEM budget: ~3/4 of physical VMEM (128 MiB v5e/v6e, 64 MiB v7x)."""
    cap = None
    try:
        cap = getattr(pltpu.get_tpu_info(), "vmem_capacity_bytes", None)
    except Exception:
        cap = None
    if not cap:
        cap = 64 * 1024 * 1024                  # conservative fallback (v7x per-core)
    return int(min(cap * 3 // 4, _VMEM_LIMIT_CAP_BYTES))


def _fused_kernel(x_ref, o_ref):
    """Whole tensor resident in VMEM: max, exp, sum and scale in one pass."""
    x = x_ref[...].astype(jnp.float32)
    # VPU sublane reduce first, then one cross-lane XLU reduce.
    m = jnp.max(jnp.max(x, axis=0, keepdims=True), axis=1, keepdims=True)   # (1, 1)
    e = jnp.exp(x - m)
    s = jnp.sum(jnp.sum(e, axis=0, keepdims=True), axis=1, keepdims=True)   # (1, 1)
    o_ref[...] = (e * (1.0 / s)).astype(o_ref.dtype)


def _reduce_kernel(x_ref, m_ref, inv_s_ref, s_ref, *, block_rows, valid_rows,
                   mask_last):
    """Online global (max, sum(exp(x - max))) reduction over row tiles."""
    i = pl.program_id(0)
    n = pl.num_programs(0)

    @pl.when(i == 0)
    def _():
        m_ref[...] = jnp.full_like(m_ref, -jnp.inf)
        inv_s_ref[...] = jnp.zeros_like(inv_s_ref)
        s_ref[...] = jnp.zeros_like(s_ref)

    def online_update(xt):
        m_old = m_ref[...]                                        # (1, 1)
        # Sublane (VPU) reduce first, then a single cross-lane (XLU) reduce.
        tile_max = jnp.max(jnp.max(xt, axis=0, keepdims=True), axis=1, keepdims=True)
        m_new = jnp.maximum(m_old, tile_max)                      # (1, 1)
        e = jnp.exp(xt - m_new)
        tile_sum = jnp.sum(jnp.sum(e, axis=0, keepdims=True), axis=1, keepdims=True)
        # Rescale the running sum to the new running max, then add this tile.
        s_ref[...] = s_ref[...] * jnp.exp(m_old - m_new) + tile_sum
        m_ref[...] = m_new

    x = x_ref[...].astype(jnp.float32)

    if mask_last:
        # Only the last tile overhangs the array; mask it there and only there.
        # Overhanging rows become -inf: neutral for the max, exp() == 0 for the sum.
        @pl.when(i < n - 1)
        def _():
            online_update(x)

        @pl.when(i == n - 1)
        def _():
            row_ids = (lax.broadcasted_iota(jnp.int32, (block_rows, 1), 0)
                       + i * block_rows)
            online_update(jnp.where(row_ids < valid_rows, x, -jnp.inf))
    else:
        online_update(x)

    @pl.when(i == n - 1)
    def _():
        inv_s_ref[...] = 1.0 / s_ref[...]


def _scale_kernel(x_ref, m_ref, inv_s_ref, o_ref):
    """Elementwise exp(x - m) * inv_s; m / inv_s read as SMEM scalars."""
    x = x_ref[...].astype(jnp.float32)
    m = m_ref[0, 0]
    inv_s = inv_s_ref[0, 0]
    o_ref[...] = (jnp.exp(x - m) * inv_s).astype(o_ref.dtype)


def my_softmax(x: jax.Array, *, tile_elems: int | None = None) -> jax.Array:
    """Reproduces MySoftmax.forward: exp(x - x.max()) / exp(x - x.max()).sum()."""
    if not jnp.issubdtype(x.dtype, jnp.floating):
        # -inf masking / padding requires a float dtype with an infinity.
        raise TypeError("my_softmax supports floating-point inputs only.")

    orig_shape = x.shape
    orig_dtype = x.dtype
    total = 1
    for d in orig_shape:
        total *= d

    # ---- lane-dense 2D factorization (pure reshape, no data movement, common case) ----
    lanes = None
    for cand in (4096, 2048, 1024, 512, 256, 128):
        if total % cand == 0 and total // cand >= 8:
            lanes = cand
            break
    if lanes is None:
        for cand in (4096, 2048, 1024, 512, 256, 128):
            if total % cand == 0:
                lanes = cand
                break

    x_flat = jnp.ravel(x)
    padded_total = total
    if lanes is None:
        # Rare ragged case: pad the flat vector to a lane multiple with -inf
        # (-inf is neutral for the global max; exp(-inf - m) == 0 for the sum).
        lanes = 128
        padded_total = -(-total // lanes) * lanes
        pad = jnp.full((padded_total - total,), -jnp.inf, dtype=x_flat.dtype)
        x_flat = jnp.concatenate([x_flat, pad])

    rows = padded_total // lanes
    x2d = x_flat.reshape(rows, lanes)

    in_it = jnp.dtype(x.dtype).itemsize
    out_it = jnp.dtype(orig_dtype).itemsize
    vmem_limit = _vmem_limit_bytes()
    budget = vmem_limit - _VMEM_HEADROOM_BYTES

    # ---- small-tensor fast path: one fused block, 2x HBM traffic, single launch ----
    # Conservative residency estimate: in + out blocks + ~3 f32 temporaries / elem.
    fused_resident = padded_total * (in_it + out_it + 24)
    if tile_elems is None and fused_resident <= budget:
        out2d = pl.pallas_call(
            _fused_kernel,
            out_shape=jax.ShapeDtypeStruct((rows, lanes), orig_dtype),
            in_specs=[pl.BlockSpec(memory_space=pltpu.MemorySpace.VMEM)],
            out_specs=pl.BlockSpec(memory_space=pltpu.MemorySpace.VMEM),
            compiler_params=pltpu.CompilerParams(vmem_limit_bytes=vmem_limit),
            cost_estimate=pl.CostEstimate(
                flops=4 * padded_total,
                transcendentals=padded_total,
                bytes_accessed=padded_total * (in_it + out_it)),
        )(x2d)
    else:
        # ---- two-pass tiled path ----
        if tile_elems is not None:
            t1 = t2 = int(tile_elems)
        else:
            # Pass 1 only double-buffers the input -> bigger tiles than pass 2,
            # which double-buffers input AND output.  "+16" leaves room for the
            # f32 intermediates the compiler materializes in VMEM.
            t1 = min(_PASS1_TILE_CAP_ELEMS, budget // (2 * in_it + 16))
            t2 = min(_PASS2_TILE_CAP_ELEMS, budget // (2 * (in_it + out_it) + 16))
            t1 = max(t1, 8 * lanes)
            t2 = max(t2, 8 * lanes)

        def _block_rows(t):
            br = max(8, (t // lanes) // 8 * 8)
            return rows if br >= rows else br   # multiple of 8, or the full dim

        # ---- pass 1: global running-max / rescaled-sum reduction ----
        br1 = _block_rows(t1)
        n1 = -(-rows // br1)
        ragged1 = (rows % br1) != 0

        m, inv_s = pl.pallas_call(
            functools.partial(_reduce_kernel, block_rows=br1,
                              valid_rows=rows, mask_last=ragged1),
            out_shape=(jax.ShapeDtypeStruct((1, 1), jnp.float32),
                       jax.ShapeDtypeStruct((1, 1), jnp.float32)),
            grid=(n1,),
            in_specs=[pl.BlockSpec((br1, lanes), lambda i: (i, 0))],
            out_specs=(pl.BlockSpec((1, 1), lambda i: (0, 0)),
                       pl.BlockSpec((1, 1), lambda i: (0, 0))),
            scratch_shapes=[pltpu.VMEM((1, 1), jnp.float32)],   # running sum
            compiler_params=pltpu.CompilerParams(
                dimension_semantics=("arbitrary",),
                vmem_limit_bytes=vmem_limit),
            cost_estimate=pl.CostEstimate(
                flops=3 * padded_total,
                transcendentals=padded_total + n1,
                bytes_accessed=padded_total * in_it + 8),
        )(x2d)

        # ---- pass 2: elementwise exp(x - m) * inv_s, written in the original dtype ----
        # The last tile may overhang the array: Pallas only writes back the valid
        # rows; the garbage rows it reads are computed on and discarded.
        br2 = _block_rows(t2)
        n2 = -(-rows // br2)

        out2d = pl.pallas_call(
            _scale_kernel,
            out_shape=jax.ShapeDtypeStruct((rows, lanes), orig_dtype),
            grid=(n2,),
            in_specs=[pl.BlockSpec((br2, lanes), lambda i: (i, 0)),
                      pl.BlockSpec(memory_space=pltpu.MemorySpace.SMEM),
                      pl.BlockSpec(memory_space=pltpu.MemorySpace.SMEM)],
            out_specs=pl.BlockSpec((br2, lanes), lambda i: (i, 0)),
            compiler_params=pltpu.CompilerParams(
                dimension_semantics=("parallel",),
                vmem_limit_bytes=vmem_limit),
            cost_estimate=pl.CostEstimate(
                flops=2 * padded_total,
                transcendentals=padded_total,
                bytes_accessed=padded_total * (in_it + out_it) + 8),
        )(x2d, m, inv_s)

    if padded_total != total:
        out = out2d.reshape(-1)[:total].reshape(orig_shape)
    else:
        out = out2d.reshape(orig_shape)
    return out


if __name__ == "__main__":
    # 1) small NCHW activation (module's typical use) -> fused single-block path
    x = jax.random.normal(jax.random.PRNGKey(0), (2, 4, 16, 16), dtype=jnp.float32)
    y = jax.block_until_ready(my_softmax(x))
    ref = jnp.exp(x - jnp.max(x))
    ref = ref / jnp.sum(ref)
    assert y.shape == x.shape and y.dtype == x.dtype
    assert jnp.allclose(y, ref, atol=1e-6, rtol=1e-6)
    assert jnp.allclose(jnp.sum(y), 1.0, atol=1e-5)

    # 2) force the tiled two-pass path (multi-tile + ragged last tile + SMEM scalars)
    x2 = jax.random.normal(jax.random.PRNGKey(0), (2, 4, 16, 80), dtype=jnp.float32)
    y2 = jax.block_until_ready(my_softmax(x2, tile_elems=8 * 1024))
    ref2 = jnp.exp(x2 - jnp.max(x2))
    ref2 = ref2 / jnp.sum(ref2)
    assert jnp.allclose(y2, ref2, atol=1e-6, rtol=1e-6)
    assert jnp.allclose(jnp.sum(y2), 1.0, atol=1e-5)

    # 3) large tensor -> default chip-sized two-pass path (big tiles, ragged pass 1)
    x3 = jax.random.normal(jax.random.PRNGKey(0), (3072, 4096), dtype=jnp.float32)
    y3 = jax.block_until_ready(my_softmax(x3))
    ref3 = jnp.exp(x3 - jnp.max(x3))
    ref3 = ref3 / jnp.sum(ref3)
    assert jnp.allclose(y3, ref3, atol=1e-9, rtol=1e-3)
    assert jnp.allclose(jnp.sum(y3), 1.0, atol=5e-4)

    print("KERNEL_OK")
</pallas_src>

<mosaic_0001>
module attributes {stable_mosaic.version = 11 : i64} {
  func.func @_fused_kernel(%arg0: memref<8x256xf32, #tpu.memory_space<vmem>>, %arg1: memref<8x256xf32, #tpu.memory_space<vmem>>) attributes {dimension_semantics = [], scalar_prefetch = 0 : i64, scratch_operands = 0 : i64, tpu.core_type = #tpu.core_type<tc>} {
    %c0 = arith.constant 0 : index
    %c0_0 = arith.constant 0 : index
    %0 = vector.load %arg0[%c0, %c0_0] : memref<8x256xf32, #tpu.memory_space<vmem>>, vector<8x256xf32>
    %cst = arith.constant dense<0xFF800000> : vector<256xf32>
    %1 = vector.multi_reduction <maximumf>, %0, %cst [0] : vector<8x256xf32> to vector<256xf32>
    %2 = vector.shape_cast %1 : vector<256xf32> to vector<1x256xf32>
    %cst_1 = arith.constant dense<0xFF800000> : vector<1xf32>
    %3 = vector.multi_reduction <maximumf>, %2, %cst_1 [1] : vector<1x256xf32> to vector<1xf32>
    %4 = vector.shape_cast %3 : vector<1xf32> to vector<1x1xf32>
    %5 = vector.broadcast %4 : vector<1x1xf32> to vector<8x256xf32>
    %6 = arith.subf %0, %5 : vector<8x256xf32>
    %7 = math.exp %6 : vector<8x256xf32>
    %cst_2 = arith.constant dense<0.000000e+00> : vector<256xf32>
    %8 = vector.multi_reduction <add>, %7, %cst_2 [0] : vector<8x256xf32> to vector<256xf32>
    %9 = vector.shape_cast %8 : vector<256xf32> to vector<1x256xf32>
    %cst_3 = arith.constant dense<0.000000e+00> : vector<1xf32>
    %10 = vector.multi_reduction <add>, %9, %cst_3 [1] : vector<1x256xf32> to vector<1xf32>
    %11 = vector.shape_cast %10 : vector<1xf32> to vector<1x1xf32>
    %cst_4 = arith.constant 1.000000e+00 : f32
    %12 = vector.broadcast %cst_4 : f32 to vector<1x1xf32>
    %13 = arith.divf %12, %11 : vector<1x1xf32>
    %14 = vector.broadcast %13 : vector<1x1xf32> to vector<8x256xf32>
    %15 = arith.mulf %7, %14 : vector<8x256xf32>
    %c0_5 = arith.constant 0 : index
    %c0_6 = arith.constant 0 : index
    %16 = vector.load %arg1[%c0_5, %c0_6] : memref<8x256xf32, #tpu.memory_space<vmem>>, vector<8x256xf32>
    tpu.vector_store %arg1[%c0_5, %c0_6], %15 {strides = array<i32>} : memref<8x256xf32, #tpu.memory_space<vmem>>, vector<8x256xf32>,
    return
  }
}

</mosaic_0001>

<llo_original>
// kernel: tpu_custom_call.1
$region0: #{tpu_custom_call.1}
  #allocation0 [shape = 'u32[]', space=smem, size = 0x4, offset = 0x4, fixed_abs, tag = 'smem constant byte address 0x4 - core index']
  #allocation1 [shape = 'u32[144,128]{1,0:T(1,128)}', space=vmem, size = 0x12000, scoped, tag = 'internal scratch']
  %s0 = inlined_call_operand.hbm [shape: f32[8,256], index: 0, kind: input, shape index: {}]
  %s1 = inlined_call_operand.hbm [shape: f32[8,256], index: 1, kind: output, shape index: {}]
  %s2 = sld [smem:[#allocation0]]
  $region18: #{tpu_custom_call.1} parent=0
    _
  %s4 = ssub.s32 1, %s2
  %s5 = scalar_select 0, %s4, %s2
  $region1: #{tpu_custom_call.1} parent=0
    #allocation2 [shape = 'u8[8192]{0}', space=vmem, size = 0x2000, scoped, tag = 'input window, operand 0, single buffered']
    #allocation3 [shape = 's32[1]{0}', space=sflag, size = 0x4, scoped, tag = 'scoped memory for tpu_custom_call.1']
    #allocation4 [shape = 's32[1]{0}', space=sflag, size = 0x4, scoped, tag = 'scoped memory for tpu_custom_call.1']
    #allocation5 [shape = 'u8[8192]{0}', space=vmem, size = 0x2000, scoped, tag = 'output window, operand 0, single buffered']
    %6 = vsyncpa [#allocation3], 0
    %7 = vsyncpa [#allocation4], 0
    // Predicated region
    $region2: #{tpu_custom_call.1} parent=1 // pred_check
      _
    $region3: #{tpu_custom_call.1} parent=1 // pred_check_branch
      %9 = sbr.rel (0) target = $region5
    $region4: #{tpu_custom_call.1} parent=1 // pred_region
      %s11 = ssub.s32 256, 256
      %12 = vsyncadd [#allocation3], %s11
      %s14 = sshll.u32 [#allocation2], 4
      %s15 = int_to_ptr.vmem [resolvable:$true] %s14
      %17 = dma.hbm_to_vmem [thread:$0]  %s0, 256, %s15, [#allocation3]
    $region5: #{tpu_custom_call.1} parent=1 // pred_fallthru
      _
    // Predicated region
    $region6: #{tpu_custom_call.1} parent=1 // pred_check
      _
    $region7: #{tpu_custom_call.1} parent=1 // pred_check_branch
      %19 = sbr.rel (0) target = $region9
    $region8: #{tpu_custom_call.1} parent=1 // pred_region
      %20 = dma.done [#allocation3], 256
    $region9: #{tpu_custom_call.1} parent=1 // pred_fallthru
      _
    %v21 = vld [vmem:[#allocation2] sm:$0xff]
    %v22 = vld [vmem:[#allocation2 + $0x8] sm:$0xff]
    %v23 = vrot.slane %v21, 4
    %v24 = vmax.f32 %v21, %v23
    %v25 = vrot.slane %v24, 2
    %v26 = vmax.f32 %v24, %v25
    %v27 = vrot.slane %v26, 1
    %v28 = vmax.f32 %v26, %v27
    %v29 = vrot.slane %v22, 4
    %v30 = vmax.f32 %v22, %v29
    %v31 = vrot.slane %v30, 2
    %v32 = vmax.f32 %v30, %v31
    %v33 = vrot.slane %v32, 1
    %v34 = vmax.f32 %v32, %v33
    %v35 = vmax.f32 %v28, %v34
    %36 = vmax.xlane.f32.xlu0 %v35
    %v37 = vpop.xlane.xlu0 %36
    %v38 = vsub.f32 %v21, %v37
    %v39 = vsub.f32 %v22, %v37
    %v40 = vmul.f32 %v38, 1.442695
    %v41 = vpow.pop %v40
    %v42 = vmul.f32 %v39, 1.442695
    %v43 = vpow.pop %v42
    %v44 = vrot.slane %v41, 4
    %v45 = vadd.f32 %v41, %v44
    %v46 = vrot.slane %v45, 2
    %v47 = vadd.f32 %v45, %v46
    %v48 = vrot.slane %v47, 1
    %v49 = vadd.f32 %v47, %v48
    %v50 = vrot.slane %v43, 4
    %v51 = vadd.f32 %v43, %v50
    %v52 = vrot.slane %v51, 2
    %v53 = vadd.f32 %v51, %v52
    %v54 = vrot.slane %v53, 1
    %v55 = vadd.f32 %v53, %v54
    %v56 = vadd.f32 %v49, %v55
    %57 = vadd.xlane.f32.xlu0 %v56
    %v58 = vpop.xlane.xlu0 %57
    %v59 = vrcp.pop %v58
    %v60 = vmul.f32 1.0, %v59
    %v61 = vmul.f32 %v41, %v60
    %v62 = vmul.f32 %v43, %v60
    %63 = vst [vmem:[#allocation5] sm:$0xff] %v61
    %64 = vst [vmem:[#allocation5 + $0x8] sm:$0xff] %v62
    // Predicated region
    $region10: #{tpu_custom_call.1} parent=1 // pred_check
      _
    $region11: #{tpu_custom_call.1} parent=1 // pred_check_branch
      %66 = sbr.rel (0) target = $region13
    $region12: #{tpu_custom_call.1} parent=1 // pred_region
      %s68 = ssub.s32 256, 256
      %69 = vsyncadd [#allocation4], %s68
      %s71 = sshll.u32 [#allocation5], 4
      %s72 = int_to_ptr.vmem [resolvable:$true] %s71
      %74 = dma.vmem_to_hbm [thread:$0]  %s72, 256, %s1, [#allocation4]
    $region13: #{tpu_custom_call.1} parent=1 // pred_fallthru
      _
    // Predicated region
    $region14: #{tpu_custom_call.1} parent=1 // pred_check
      _
    $region15: #{tpu_custom_call.1} parent=1 // pred_check_branch
      %76 = sbr.rel (0) target = $region17
    $region16: #{tpu_custom_call.1} parent=1 // pred_region
      %77 = dma.done [#allocation4], 256
    $region17: #{tpu_custom_call.1} parent=1 // pred_fallthru
      _
    %78 = vsyncpa [#allocation3], 1
    %79 = vsyncpa [#allocation4], 1

</llo_original>
